<compile_context>
chip_gen: v6e
topology: v6e:2x2x1
jax: 0.10.0
libtpu: 0.0.40
codegen_flags: <defaults>
</compile_context>

<pallas_src>
import math

import jax
import jax.numpy as jnp
from jax.experimental import pallas as pl
from jax.experimental.pallas import tpu as pltpu


def _pe_add_kernel(x_ref, pe_ref, o_ref):
    # x_ref/o_ref block: (ts, D2) when batch is squeezed, else (bt, ts, D2).
    # pe_ref block: (ts, D2); jnp broadcasting covers both cases. Pure VPU add.
    o_ref[...] = (x_ref[...] + pe_ref[...]).astype(o_ref.dtype)


def _make_pe_table(seq_len, d_model):
    """Sinusoidal PE table, exact PyTorch formula. Returns (seq_len, d_model) f32."""
    position = jnp.arange(seq_len, dtype=jnp.float32)[:, None]               # (S, 1)
    div_term = jnp.exp(jnp.arange(0, d_model, 2, dtype=jnp.float32)
                       * (-math.log(10000.0) / d_model))                     # (ceil(D/2),)
    angles = position * div_term                                             # (S, ceil(D/2))
    pe = jnp.zeros((seq_len, d_model), jnp.float32)
    pe = pe.at[:, 0::2].set(jnp.sin(angles))
    pe = pe.at[:, 1::2].set(jnp.cos(angles)[:, : d_model // 2])              # odd-D safe
    return pe


def positional_encoding(x, *, block_bytes=2 * 1024 * 1024):
    """x: (B, S, D) float array. Returns x + sinusoidal PE (broadcast over B)."""
    B, S, D = x.shape
    itemsize = jnp.dtype(x.dtype).itemsize

    # (1) Lane-density fold: (S, D) -> (S/f, f*D) with f*D % 128 == 0.
    #     Pad S up to a multiple of f when needed: full-width stores beat
    #     masked vst.msk on every tile; padding costs < 128 extra rows.
    f, pad = 1, 0
    if D % 128 != 0:
        cand = 128 // math.gcd(D, 128)
        if cand > 1:
            f = cand
            pad = (-S) % cand
    S_pad = S + pad

    # (2) PE table built once in plain JAX (exact PyTorch formula), passed in
    #     x.dtype (for bf16 x this halves PE bytes; identical for f32 x).
    pe = _make_pe_table(S_pad, D).astype(x.dtype)

    xp = jnp.pad(x, ((0, 0), (0, pad), (0, 0))) if pad else x
    S2, D2 = S_pad // f, D * f
    x2 = xp.reshape(B, S2, D2)
    pe2 = pe.reshape(S2, D2)

    # (3) Tile the folded sequence axis: ~block_bytes per x block, rounded to
    #     the dtype's sublane packing, preferring a tile that divides S2.
    pack = 8 * max(1, 4 // itemsize)            # 8 f32 / 16 bf16 / 32 int8-fp8
    rows_budget = max(pack, block_bytes // (D2 * itemsize))
    ts = min(S2, rows_budget)
    if ts < S2:
        ts = max(pack, (ts // pack) * pack)
        if S2 % ts != 0:
            t = ts
            while t >= max(pack, ts // 2):
                if S2 % t == 0:
                    ts = t
                    break
                t -= pack
    else:
        ts = S2                                 # single tile: block == full dim
    num_s = pl.cdiv(S2, ts)

    # (4) Fold batch into the block when the whole folded sequence fits well
    #     under the block budget: cuts grid trip count (~0.35 us per step).
    bt = 1
    if num_s == 1:
        per_batch = max(1, S2 * D2 * itemsize)
        bt = int(min(B, max(1, block_bytes // per_batch)))
        while B % bt != 0:                      # keep batch tiles full (no masking)
            bt -= 1
    num_b = pl.cdiv(B, bt)

    # (5) Scoped-VMEM budget: double-buffered x & out blocks + (<=2x) pe block,
    #     with headroom; clamp to [16, 32] MiB (safe on v5e/v6e/v7x).
    x_blk = bt * ts * D2 * itemsize
    pe_blk = ts * D2 * itemsize
    needed = 2 * x_blk + 2 * x_blk + 2 * pe_blk
    vmem_limit = int(min(32 << 20, max(16 << 20, 2 * needed)))

    x_block = (None, ts, D2) if bt == 1 else (bt, ts, D2)   # None => squeezed batch
    out_shape = jax.ShapeDtypeStruct((B, S2, D2), x.dtype)

    def _run(pe_pipeline_mode):
        pe_kwargs = {} if pe_pipeline_mode is None else {"pipeline_mode": pe_pipeline_mode}
        return pl.pallas_call(
            _pe_add_kernel,
            out_shape=out_shape,
            grid_spec=pltpu.PrefetchScalarGridSpec(
                num_scalar_prefetch=0,
                grid=(num_s, num_b),            # batch innermost: pe block stays resident
                in_specs=[
                    pl.BlockSpec(x_block, lambda s, b: (b, s, 0)),
                    pl.BlockSpec((ts, D2), lambda s, b: (s, 0), **pe_kwargs),
                ],
                out_specs=pl.BlockSpec(x_block, lambda s, b: (b, s, 0)),
            ),
            compiler_params=pltpu.CompilerParams(
                dimension_semantics=("parallel", "parallel"),
                vmem_limit_bytes=vmem_limit,
            ),
            # Saves only the output allocation; a bandwidth win additionally
            # requires the caller to donate x (jax.jit(..., donate_argnums=...)).
            input_output_aliases={0: 0},
        )(x2, pe2)

    try:
        # pe's block index never changes over the inner batch axis -> one
        # buffer suffices; the freed VMEM goes toward bigger x/out tiles.
        out2 = _run(pl.Buffered(1))
    except Exception:
        out2 = _run(None)                       # compiler rejected buffer_count=1

    out = out2.reshape(B, S_pad, D)
    return out[:, :S, :] if pad else out


def _positional_encoding_ref(x):
    """Pure-JAX reference mirroring the PyTorch module."""
    B, S, D = x.shape
    pe = _make_pe_table(S, D)
    return (x + pe[None]).astype(x.dtype)


if __name__ == "__main__":
    key = jax.random.PRNGKey(0)
    B, S, D = 2, 8, 32          # batch=2, seq=8, d_model=32
    x = jax.random.normal(key, (B, S, D), dtype=jnp.float32)

    out = positional_encoding(x)
    out = jax.block_until_ready(out)

    ref = _positional_encoding_ref(x)
    assert out.shape == (B, S, D)
    assert jnp.allclose(out, ref, atol=1e-5, rtol=1e-5), "mismatch vs reference"

    print("KERNEL_OK")
</pallas_src>

<mosaic_0001>
module attributes {stable_mosaic.version = 11 : i64} {
  func.func @_pe_add_kernel(%arg0: i32, %arg1: i32, %arg2: memref<2x2x128xf32, #tpu.memory_space<vmem>>, %arg3: memref<2x128xf32, #tpu.memory_space<vmem>>, %arg4: memref<2x2x128xf32, #tpu.memory_space<vmem>>) attributes {dimension_semantics = [#tpu.dimension_semantics<parallel>, #tpu.dimension_semantics<parallel>], iteration_bounds = array<i64: 1, 1>, scalar_prefetch = 0 : i64, scratch_operands = 0 : i64, tpu.core_type = #tpu.core_type<tc>, window_params = [{transform_indices = @transform_0, window_bounds = array<i64: 2, 2, 128>}, {pipeline_mode = #tpu.pipeline_mode<synchronous>, transform_indices = @transform_1, window_bounds = array<i64: 2, 128>}, {transform_indices = @transform_2, window_bounds = array<i64: 2, 2, 128>}]} {
    %c0 = arith.constant 0 : index
    %c0_0 = arith.constant 0 : index
    %c0_1 = arith.constant 0 : index
    %0 = vector.load %arg2[%c0, %c0_0, %c0_1] : memref<2x2x128xf32, #tpu.memory_space<vmem>>, vector<2x2x128xf32>
    %c0_2 = arith.constant 0 : index
    %c0_3 = arith.constant 0 : index
    %1 = vector.load %arg3[%c0_2, %c0_3] : memref<2x128xf32, #tpu.memory_space<vmem>>, vector<2x128xf32>
    %2 = vector.shape_cast %1 : vector<2x128xf32> to vector<1x2x128xf32>
    %3 = vector.broadcast %2 : vector<1x2x128xf32> to vector<2x2x128xf32>
    %4 = arith.addf %0, %3 : vector<2x2x128xf32>
    %c0_4 = arith.constant 0 : index
    %c0_5 = arith.constant 0 : index
    %c0_6 = arith.constant 0 : index
    %5 = vector.load %arg4[%c0_4, %c0_5, %c0_6] : memref<2x2x128xf32, #tpu.memory_space<vmem>>, vector<2x2x128xf32>
    tpu.vector_store %arg4[%c0_4, %c0_5, %c0_6], %4 {strides = array<i32>} : memref<2x2x128xf32, #tpu.memory_space<vmem>>, vector<2x2x128xf32>,
    return
  }
  func.func @transform_0(%arg0: i32, %arg1: i32) -> (i32, i32, i32) {
    %c0_i32 = arith.constant 0 : i32
    %c0_i32_0 = arith.constant 0 : i32
    return %arg1, %arg0, %c0_i32 : i32, i32, i32
  }
  func.func @transform_1(%arg0: i32, %arg1: i32) -> (i32, i32) {
    %c0_i32 = arith.constant 0 : i32
    %c0_i32_0 = arith.constant 0 : i32
    return %arg0, %c0_i32 : i32, i32
  }
  func.func @transform_2(%arg0: i32, %arg1: i32) -> (i32, i32, i32) {
    %c0_i32 = arith.constant 0 : i32
    %c0_i32_0 = arith.constant 0 : i32
    return %arg1, %arg0, %c0_i32 : i32, i32, i32
  }
}

module attributes {stable_mosaic.version = 11 : i64} {
  func.func @_pe_add_kernel(%arg0: i32, %arg1: i32, %arg2: memref<2x2x128xf32, #tpu.memory_space<vmem>>, %arg3: memref<2x128xf32, #tpu.memory_space<vmem>>, %arg4: memref<2x2x128xf32, #tpu.memory_space<vmem>>) attributes {dimension_semantics = [#tpu.dimension_semantics<parallel>, #tpu.dimension_semantics<parallel>], iteration_bounds = array<i64: 1, 1>, scalar_prefetch = 0 : i64, scratch_operands = 0 : i64, tpu.core_type = #tpu.core_type<tc>, window_params = [{transform_indices = @transform_0, window_bounds = array<i64: 2, 2, 128>}, {transform_indices = @transform_1, window_bounds = array<i64: 2, 128>}, {transform_indices = @transform_2, window_bounds = array<i64: 2, 2, 128>}]} {
    %c0 = arith.constant 0 : index
    %c0_0 = arith.constant 0 : index
    %c0_1 = arith.constant 0 : index
    %0 = vector.load %arg2[%c0, %c0_0, %c0_1] : memref<2x2x128xf32, #tpu.memory_space<vmem>>, vector<2x2x128xf32>
    %c0_2 = arith.constant 0 : index
    %c0_3 = arith.constant 0 : index
    %1 = vector.load %arg3[%c0_2, %c0_3] : memref<2x128xf32, #tpu.memory_space<vmem>>, vector<2x128xf32>
    %2 = vector.shape_cast %1 : vector<2x128xf32> to vector<1x2x128xf32>
    %3 = vector.broadcast %2 : vector<1x2x128xf32> to vector<2x2x128xf32>
    %4 = arith.addf %0, %3 : vector<2x2x128xf32>
    %c0_4 = arith.constant 0 : index
    %c0_5 = arith.constant 0 : index
    %c0_6 = arith.constant 0 : index
    %5 = vector.load %arg4[%c0_4, %c0_5, %c0_6] : memref<2x2x128xf32, #tpu.memory_space<vmem>>, vector<2x2x128xf32>
    tpu.vector_store %arg4[%c0_4, %c0_5, %c0_6], %4 {strides = array<i32>} : memref<2x2x128xf32, #tpu.memory_space<vmem>>, vector<2x2x128xf32>,
    return
  }
  func.func @transform_0(%arg0: i32, %arg1: i32) -> (i32, i32, i32) {
    %c0_i32 = arith.constant 0 : i32
    %c0_i32_0 = arith.constant 0 : i32
    return %arg1, %arg0, %c0_i32 : i32, i32, i32
  }
  func.func @transform_1(%arg0: i32, %arg1: i32) -> (i32, i32) {
    %c0_i32 = arith.constant 0 : i32
    %c0_i32_0 = arith.constant 0 : i32
    return %arg0, %c0_i32 : i32, i32
  }
  func.func @transform_2(%arg0: i32, %arg1: i32) -> (i32, i32, i32) {
    %c0_i32 = arith.constant 0 : i32
    %c0_i32_0 = arith.constant 0 : i32
    return %arg1, %arg0, %c0_i32 : i32, i32, i32
  }
}

</mosaic_0001>

<llo_original>
// kernel: tpu_custom_call.1
$region0: #{tpu_custom_call.1}
  #allocation0 [shape = 'u32[]', space=smem, size = 0x4, offset = 0x4, fixed_abs, tag = 'smem constant byte address 0x4 - core index']
  #allocation1 [shape = 'u32[144,128]{1,0:T(1,128)}', space=vmem, size = 0x12000, scoped, tag = 'internal scratch']
  %s0 = inlined_call_operand.hbm [shape: f32[2,2,128], index: 0, kind: input, shape index: {}, may-alias: {0,2}]
  %s1 = inlined_call_operand.vmem [shape: f32[2,128], index: 1, kind: input, shape index: {}]
  %s2 = inlined_call_operand.hbm [shape: f32[2,2,128], index: 2, kind: output, shape index: {}, may-alias: {0,2}]
  %s3 = sld [smem:[#allocation0]]
  $region22: #{tpu_custom_call.1} parent=0
    _
  %s5 = ssub.s32 1, %s3
  %s6 = scalar_select 0, %s5, %s3
  $region1: #{tpu_custom_call.1} parent=0
    #allocation2 [shape = 'u8[2048]{0}', space=vmem, size = 0x800, scoped, tag = 'input window, operand 0, single buffered']
    #allocation3 [shape = 's32[1]{0}', space=sflag, size = 0x4, scoped, tag = 'scoped memory for tpu_custom_call.1']
    #allocation4 [shape = 's32[1]{0}', space=sflag, size = 0x4, scoped, tag = 'scoped memory for tpu_custom_call.1']
    #allocation5 [shape = 'u8[2048]{0}', space=vmem, size = 0x800, scoped, tag = 'output window, operand 0, single buffered']
    %7 = vsyncpa [#allocation3], 0
    %8 = vsyncpa [#allocation4], 0
    // Predicated region
    $region2: #{tpu_custom_call.1} parent=1 // pred_check
      _
    $region3: #{tpu_custom_call.1} parent=1 // pred_check_branch
      %10 = sbr.rel (0) target = $region5
    $region4: #{tpu_custom_call.1} parent=1 // pred_region
      %s12 = ssub.s32 64, 64
      %13 = vsyncadd [#allocation3], %s12
      %s14 = sshll.u32 [#allocation2], 4
      %s15 = int_to_ptr.vmem [resolvable:$true] %s14
      %20 = dma.hbm_to_vmem [thread:$0]  %s0, 64, %s15, [#allocation3], 32, 32, 2
    $region5: #{tpu_custom_call.1} parent=1 // pred_fallthru
      _
    // Predicated region
    $region6: #{tpu_custom_call.1} parent=1 // pred_check
      _
    $region7: #{tpu_custom_call.1} parent=1 // pred_check_branch
      %22 = sbr.rel (0) target = $region9
    $region8: #{tpu_custom_call.1} parent=1 // pred_region
      _
    $region9: #{tpu_custom_call.1} parent=1 // pred_fallthru
      _
    // Predicated region
    $region10: #{tpu_custom_call.1} parent=1 // pred_check
      _
    $region11: #{tpu_custom_call.1} parent=1 // pred_check_branch
      %24 = sbr.rel (0) target = $region13
    $region12: #{tpu_custom_call.1} parent=1 // pred_region
      %25 = dma.done [#allocation3], 64
    $region13: #{tpu_custom_call.1} parent=1 // pred_fallthru
      _
    %v26 = vld [vmem:[#allocation2] sm:$0x3]
    %v27 = vld [vmem:[#allocation2 + $0x2] sm:$0x3]
    %v28 = vld [vmem:[%s1] sm:$0x3]
    %v29 = vadd.f32 %v26, %v28
    %v30 = vadd.f32 %v27, %v28
    %31 = vst [vmem:[#allocation5] sm:$0x3] %v29
    %32 = vst [vmem:[#allocation5 + $0x2] sm:$0x3] %v30
    // Predicated region
    $region14: #{tpu_custom_call.1} parent=1 // pred_check
      _
    $region15: #{tpu_custom_call.1} parent=1 // pred_check_branch
      %34 = sbr.rel (0) target = $region17
    $region16: #{tpu_custom_call.1} parent=1 // pred_region
      %s36 = ssub.s32 64, 64
      %37 = vsyncadd [#allocation4], %s36
      %s38 = sshll.u32 [#allocation5], 4
      %s39 = int_to_ptr.vmem [resolvable:$true] %s38
      %44 = dma.vmem_to_hbm [thread:$0]  %s39, 64, %s2, [#allocation4], 32, 32, 2
    $region17: #{tpu_custom_call.1} parent=1 // pred_fallthru
      _
    // Predicated region
    $region18: #{tpu_custom_call.1} parent=1 // pred_check
      _
    $region19: #{tpu_custom_call.1} parent=1 // pred_check_branch
      %46 = sbr.rel (0) target = $region21
    $region20: #{tpu_custom_call.1} parent=1 // pred_region
      %47 = dma.done [#allocation4], 64
    $region21: #{tpu_custom_call.1} parent=1 // pred_fallthru
      _
    %48 = vsyncpa [#allocation3], 1
    %49 = vsyncpa [#allocation4], 1

// kernel: tpu_custom_call.1
$region0: #{tpu_custom_call.1}
  #allocation0 [shape = 'u32[]', space=smem, size = 0x4, offset = 0x4, fixed_abs, tag = 'smem constant byte address 0x4 - core index']
  #allocation1 [shape = 'u32[144,128]{1,0:T(1,128)}', space=vmem, size = 0x12000, scoped, tag = 'internal scratch']
  %s0 = inlined_call_operand.hbm [shape: f32[2,2,128], index: 0, kind: input, shape index: {}, may-alias: {0,2}]
  %s1 = inlined_call_operand.vmem [shape: f32[2,128], index: 1, kind: input, shape index: {}]
  %s2 = inlined_call_operand.hbm [shape: f32[2,2,128], index: 2, kind: output, shape index: {}, may-alias: {0,2}]
  %s3 = sld [smem:[#allocation0]]
  $region22: #{tpu_custom_call.1} parent=0
    _
  %s5 = ssub.s32 1, %s3
  %s6 = scalar_select 0, %s5, %s3
  $region1: #{tpu_custom_call.1} parent=0
    #allocation2 [shape = 'u8[2048]{0}', space=vmem, size = 0x800, scoped, tag = 'input window, operand 0, single buffered']
    #allocation3 [shape = 's32[1]{0}', space=sflag, size = 0x4, scoped, tag = 'scoped memory for tpu_custom_call.1']
    #allocation4 [shape = 's32[1]{0}', space=sflag, size = 0x4, scoped, tag = 'scoped memory for tpu_custom_call.1']
    #allocation5 [shape = 'u8[2048]{0}', space=vmem, size = 0x800, scoped, tag = 'output window, operand 0, single buffered']
    %7 = vsyncpa [#allocation3], 0
    %8 = vsyncpa [#allocation4], 0
    // Predicated region
    $region2: #{tpu_custom_call.1} parent=1 // pred_check
      _
    $region3: #{tpu_custom_call.1} parent=1 // pred_check_branch
      %10 = sbr.rel (0) target = $region5
    $region4: #{tpu_custom_call.1} parent=1 // pred_region
      %s12 = ssub.s32 64, 64
      %13 = vsyncadd [#allocation3], %s12
      %s14 = sshll.u32 [#allocation2], 4
      %s15 = int_to_ptr.vmem [resolvable:$true] %s14
      %20 = dma.hbm_to_vmem [thread:$0]  %s0, 64, %s15, [#allocation3], 32, 32, 2
    $region5: #{tpu_custom_call.1} parent=1 // pred_fallthru
      _
    // Predicated region
    $region6: #{tpu_custom_call.1} parent=1 // pred_check
      _
    $region7: #{tpu_custom_call.1} parent=1 // pred_check_branch
      %22 = sbr.rel (0) target = $region9
    $region8: #{tpu_custom_call.1} parent=1 // pred_region
      _
    $region9: #{tpu_custom_call.1} parent=1 // pred_fallthru
      _
    // Predicated region
    $region10: #{tpu_custom_call.1} parent=1 // pred_check
      _
    $region11: #{tpu_custom_call.1} parent=1 // pred_check_branch
      %24 = sbr.rel (0) target = $region13
    $region12: #{tpu_custom_call.1} parent=1 // pred_region
      %25 = dma.done [#allocation3], 64
    $region13: #{tpu_custom_call.1} parent=1 // pred_fallthru
      _
    %v26 = vld [vmem:[#allocation2] sm:$0x3]
    %v27 = vld [vmem:[#allocation2 + $0x2] sm:$0x3]
    %v28 = vld [vmem:[%s1] sm:$0x3]
    %v29 = vadd.f32 %v26, %v28
    %v30 = vadd.f32 %v27, %v28
    %31 = vst [vmem:[#allocation5] sm:$0x3] %v29
    %32 = vst [vmem:[#allocation5 + $0x2] sm:$0x3] %v30
    // Predicated region
    $region14: #{tpu_custom_call.1} parent=1 // pred_check
      _
    $region15: #{tpu_custom_call.1} parent=1 // pred_check_branch
      %34 = sbr.rel (0) target = $region17
    $region16: #{tpu_custom_call.1} parent=1 // pred_region
      %s36 = ssub.s32 64, 64
      %37 = vsyncadd [#allocation4], %s36
      %s38 = sshll.u32 [#allocation5], 4
      %s39 = int_to_ptr.vmem [resolvable:$true] %s38
      %44 = dma.vmem_to_hbm [thread:$0]  %s39, 64, %s2, [#allocation4], 32, 32, 2
    $region17: #{tpu_custom_call.1} parent=1 // pred_fallthru
      _
    // Predicated region
    $region18: #{tpu_custom_call.1} parent=1 // pred_check
      _
    $region19: #{tpu_custom_call.1} parent=1 // pred_check_branch
      %46 = sbr.rel (0) target = $region21
    $region20: #{tpu_custom_call.1} parent=1 // pred_region
      %47 = dma.done [#allocation4], 64
    $region21: #{tpu_custom_call.1} parent=1 // pred_fallthru
      _
    %48 = vsyncpa [#allocation3], 1
    %49 = vsyncpa [#allocation4], 1

</llo_original>
